<compile_context>
chip_gen: v5e
topology: v5e:2x2
jax: 0.10.0
libtpu: 0.0.40
codegen_flags: <defaults>
</compile_context>

<pallas_src>
import jax
import jax.numpy as jnp
from jax.experimental import pallas as pl
from jax.experimental.pallas import tpu as pltpu


def _make_linear_add_relu_kernel(cin: int):
    """v = W @ x + (bias + other); outputs relu(v) and v, all on the VPU."""

    def kernel(w_ref, b_ref, x_ref, relu_ref, lin_ref):
        # w_ref: (Cout, Cin)   b_ref: (Cout, 1)   x_ref: (Cin, TM)
        x = x_ref[...]                       # (Cin, TM)
        w = w_ref[...]                       # (Cout, Cin)
        # 24 broadcast FMAs (Cout x Cin) over lane-dense vregs; no MXU.
        y = w[:, 0:1] * x[0:1, :]            # (Cout, TM)
        for c in range(1, cin):
            y = y + w[:, c:c + 1] * x[c:c + 1, :]
        y = y + b_ref[...]                   # bias already has `other` folded in
        lin_ref[...] = y.astype(lin_ref.dtype)
        relu_ref[...] = jnp.maximum(y, 0.0).astype(relu_ref.dtype)

    return kernel


def model_forward(x, weight, bias, other=-3.0):
    """x: (B, H, W, 3) f32; weight: (8, 3); bias: (8,).

    Returns (v3, v2), each (B, H, W, 8):
      v1 = x @ W^T + bias ; v2 = v1 + other ; v3 = relu(v2)
    """
    B, H, W, Cin = x.shape
    Cout = weight.shape[0]
    M = B * H * W

    # Channels-first, lane-dense layout: (Cin, M) input, (Cout, M) outputs.
    x_cm = x.reshape(M, Cin).T                                   # (Cin, M)
    b_fused = (bias.astype(jnp.float32) + jnp.float32(other)).reshape(Cout, 1)
    w = weight.astype(jnp.float32)                               # (Cout, Cin)

    # Tile M along the lane axis; pad M to a multiple of the tile.
    TM_TARGET = 8192                      # ~1.2 MiB double-buffered footprint
    m_aligned = ((M + 127) // 128) * 128
    tm = min(TM_TARGET, m_aligned)
    m_pad = ((m_aligned + tm - 1) // tm) * tm
    if m_pad != M:
        x_cm = jnp.pad(x_cm, ((0, 0), (0, m_pad - M)))

    grid = (m_pad // tm,)

    out_shape = (
        jax.ShapeDtypeStruct((Cout, m_pad), jnp.float32),        # v3 (relu)
        jax.ShapeDtypeStruct((Cout, m_pad), jnp.float32),        # v2 (pre-relu)
    )

    relu_cm, lin_cm = pl.pallas_call(
        _make_linear_add_relu_kernel(Cin),
        out_shape=out_shape,
        grid=grid,
        in_specs=[
            pl.BlockSpec((Cout, Cin), lambda i: (0, 0)),         # weight
            pl.BlockSpec((Cout, 1), lambda i: (0, 0)),           # bias + other
            pl.BlockSpec((Cin, tm), lambda i: (0, i)),           # x tile
        ],
        out_specs=(
            pl.BlockSpec((Cout, tm), lambda i: (0, i)),          # relu tile
            pl.BlockSpec((Cout, tm), lambda i: (0, i)),          # linear tile
        ),
        compiler_params=pltpu.CompilerParams(
            dimension_semantics=("parallel",),
        ),
    )(w, b_fused, x_cm)

    v3 = relu_cm[:, :M].T.reshape(B, H, W, Cout)
    v2 = lin_cm[:, :M].T.reshape(B, H, W, Cout)
    return v3, v2


if __name__ == "__main__":
    key = jax.random.PRNGKey(0)
    kx, kw, kb = jax.random.split(key, 3)

    # Small shapes consistent with the forward pass: linear acts on last dim = 3.
    B, H, W, Cin, Cout = 2, 16, 16, 3, 8
    x = jax.random.normal(kx, (B, H, W, Cin), dtype=jnp.float32)

    # Deterministic Linear(3, 8) parameters (PyTorch-style uniform init bound).
    bound = 1.0 / jnp.sqrt(jnp.float32(Cin))
    weight = jax.random.uniform(kw, (Cout, Cin), jnp.float32, -bound, bound)
    bias = jax.random.uniform(kb, (Cout,), jnp.float32, -bound, bound)

    v3, v2 = model_forward(x, weight, bias, other=-3.0)
    jax.block_until_ready((v3, v2))

    # Sanity check against plain-JAX reference.
    v1_ref = jnp.einsum("bhwc,oc->bhwo", x, weight) + bias
    v2_ref = v1_ref + (-3.0)
    v3_ref = jnp.maximum(v2_ref, 0.0)
    assert jnp.allclose(v2, v2_ref, atol=1e-5, rtol=1e-5)
    assert jnp.allclose(v3, v3_ref, atol=1e-5, rtol=1e-5)

    print("KERNEL_OK")
</pallas_src>

<mosaic_0001>
module attributes {stable_mosaic.version = 11 : i64} {
  func.func @kernel(%arg0: i32, %arg1: memref<8x3xf32, #tpu.memory_space<vmem>>, %arg2: memref<8x1xf32, #tpu.memory_space<vmem>>, %arg3: memref<3x512xf32, #tpu.memory_space<vmem>>, %arg4: memref<8x512xf32, #tpu.memory_space<vmem>>, %arg5: memref<8x512xf32, #tpu.memory_space<vmem>>) attributes {dimension_semantics = [#tpu.dimension_semantics<parallel>], iteration_bounds = array<i64: 1>, scalar_prefetch = 0 : i64, scratch_operands = 0 : i64, tpu.core_type = #tpu.core_type<tc>, window_params = [{pipeline_mode = #tpu.pipeline_mode<synchronous>, transform_indices = @transform_0, window_bounds = array<i64: 8, 3>}, {pipeline_mode = #tpu.pipeline_mode<synchronous>, transform_indices = @transform_1, window_bounds = array<i64: 8, 1>}, {transform_indices = @transform_2, window_bounds = array<i64: 3, 512>}, {transform_indices = @transform_3, window_bounds = array<i64: 8, 512>}, {transform_indices = @transform_4, window_bounds = array<i64: 8, 512>}]} {
    %c0 = arith.constant 0 : index
    %c0_0 = arith.constant 0 : index
    %0 = vector.load %arg3[%c0, %c0_0] : memref<3x512xf32, #tpu.memory_space<vmem>>, vector<3x512xf32>
    %c0_1 = arith.constant 0 : index
    %c0_2 = arith.constant 0 : index
    %1 = vector.load %arg1[%c0_1, %c0_2] : memref<8x3xf32, #tpu.memory_space<vmem>>, vector<8x3xf32>
    %2 = vector.extract_strided_slice %1 {offsets = [0, 0], sizes = [8, 1], strides = [1, 1]} : vector<8x3xf32> to vector<8x1xf32>
    %3 = vector.extract_strided_slice %0 {offsets = [0, 0], sizes = [1, 512], strides = [1, 1]} : vector<3x512xf32> to vector<1x512xf32>
    %4 = vector.broadcast %2 : vector<8x1xf32> to vector<8x512xf32>
    %5 = vector.broadcast %3 : vector<1x512xf32> to vector<8x512xf32>
    %6 = arith.mulf %4, %5 : vector<8x512xf32>
    %7 = vector.extract_strided_slice %1 {offsets = [0, 1], sizes = [8, 1], strides = [1, 1]} : vector<8x3xf32> to vector<8x1xf32>
    %8 = vector.extract_strided_slice %0 {offsets = [1, 0], sizes = [1, 512], strides = [1, 1]} : vector<3x512xf32> to vector<1x512xf32>
    %9 = vector.broadcast %7 : vector<8x1xf32> to vector<8x512xf32>
    %10 = vector.broadcast %8 : vector<1x512xf32> to vector<8x512xf32>
    %11 = arith.mulf %9, %10 : vector<8x512xf32>
    %12 = arith.addf %6, %11 : vector<8x512xf32>
    %13 = vector.extract_strided_slice %1 {offsets = [0, 2], sizes = [8, 1], strides = [1, 1]} : vector<8x3xf32> to vector<8x1xf32>
    %14 = vector.extract_strided_slice %0 {offsets = [2, 0], sizes = [1, 512], strides = [1, 1]} : vector<3x512xf32> to vector<1x512xf32>
    %15 = vector.broadcast %13 : vector<8x1xf32> to vector<8x512xf32>
    %16 = vector.broadcast %14 : vector<1x512xf32> to vector<8x512xf32>
    %17 = arith.mulf %15, %16 : vector<8x512xf32>
    %18 = arith.addf %12, %17 : vector<8x512xf32>
    %c0_3 = arith.constant 0 : index
    %c0_4 = arith.constant 0 : index
    %19 = vector.load %arg2[%c0_3, %c0_4] : memref<8x1xf32, #tpu.memory_space<vmem>>, vector<8x1xf32>
    %20 = vector.broadcast %19 : vector<8x1xf32> to vector<8x512xf32>
    %21 = arith.addf %18, %20 : vector<8x512xf32>
    %c0_5 = arith.constant 0 : index
    %c0_6 = arith.constant 0 : index
    %22 = vector.load %arg5[%c0_5, %c0_6] : memref<8x512xf32, #tpu.memory_space<vmem>>, vector<8x512xf32>
    tpu.vector_store %arg5[%c0_5, %c0_6], %21 {strides = array<i32>} : memref<8x512xf32, #tpu.memory_space<vmem>>, vector<8x512xf32>,
    %cst = arith.constant 0.000000e+00 : f32
    %23 = vector.broadcast %cst : f32 to vector<8x512xf32>
    %24 = arith.maximumf %21, %23 : vector<8x512xf32>
    %c0_7 = arith.constant 0 : index
    %c0_8 = arith.constant 0 : index
    %25 = vector.load %arg4[%c0_7, %c0_8] : memref<8x512xf32, #tpu.memory_space<vmem>>, vector<8x512xf32>
    tpu.vector_store %arg4[%c0_7, %c0_8], %24 {strides = array<i32>} : memref<8x512xf32, #tpu.memory_space<vmem>>, vector<8x512xf32>,
    return
  }
  func.func @transform_0(%arg0: i32) -> (i32, i32) {
    %c0_i32 = arith.constant 0 : i32
    %c0_i32_0 = arith.constant 0 : i32
    %c0_i32_1 = arith.constant 0 : i32
    return %c0_i32, %c0_i32_0 : i32, i32
  }
  func.func @transform_1(%arg0: i32) -> (i32, i32) {
    %c0_i32 = arith.constant 0 : i32
    %c0_i32_0 = arith.constant 0 : i32
    %c0_i32_1 = arith.constant 0 : i32
    return %c0_i32, %c0_i32_0 : i32, i32
  }
  func.func @transform_2(%arg0: i32) -> (i32, i32) {
    %c0_i32 = arith.constant 0 : i32
    %c0_i32_0 = arith.constant 0 : i32
    return %c0_i32, %arg0 : i32, i32
  }
  func.func @transform_3(%arg0: i32) -> (i32, i32) {
    %c0_i32 = arith.constant 0 : i32
    %c0_i32_0 = arith.constant 0 : i32
    return %c0_i32, %arg0 : i32, i32
  }
  func.func @transform_4(%arg0: i32) -> (i32, i32) {
    %c0_i32 = arith.constant 0 : i32
    %c0_i32_0 = arith.constant 0 : i32
    return %c0_i32, %arg0 : i32, i32
  }
}

</mosaic_0001>

<llo_original>
// kernel: tpu_custom_call.1
$region0: #{tpu_custom_call.1}
  #allocation0 [shape = 'u32[]', space=smem, size = 0x4, offset = 0x4, fixed_abs, tag = 'smem constant byte address 0x4 - core index']
  #allocation1 [shape = 'u32[72,128]{1,0:T(1,128)}', space=vmem, size = 0x9000, scoped, tag = 'internal scratch']
  %s0 = inlined_call_operand.vmem [shape: f32[8,3], index: 0, kind: input, shape index: {}]
  %s1 = inlined_call_operand.vmem [shape: f32[8,1], index: 1, kind: input, shape index: {}]
  %s2 = inlined_call_operand.vmem [shape: f32[3,512], index: 2, kind: input, shape index: {}]
  %s3 = inlined_call_operand.hbm [shape: f32[8,512], index: 3, kind: output, shape index: {0}]
  %s4 = inlined_call_operand.hbm [shape: f32[8,512], index: 4, kind: output, shape index: {1}]
  %5 = xla_tuple %s3, %s4
  %s6 = sld [smem:[#allocation0]]
  $region30: #{tpu_custom_call.1} parent=0
    _
  %s8 = ssub.s32 1, %s6
  %s9 = scalar_select 0, %s8, %s6
  $region1: #{tpu_custom_call.1} parent=0
    #allocation2 [shape = 'u8[16384]{0}', space=vmem, size = 0x4000, scoped, tag = 'output window, operand 0, single buffered']
    #allocation3 [shape = 's32[1]{0}', space=sflag, size = 0x4, scoped, tag = 'scoped memory for tpu_custom_call.1']
    #allocation4 [shape = 'u8[16384]{0}', space=vmem, size = 0x4000, scoped, tag = 'output window, operand 1, single buffered']
    #allocation5 [shape = 's32[1]{0}', space=sflag, size = 0x4, scoped, tag = 'scoped memory for tpu_custom_call.1']
    %10 = vsyncpa [#allocation3], 0
    %11 = vsyncpa [#allocation5], 0
    // Predicated region
    $region2: #{tpu_custom_call.1} parent=1 // pred_check
      _
    $region3: #{tpu_custom_call.1} parent=1 // pred_check_branch
      %13 = sbr.rel (0) target = $region5
    $region4: #{tpu_custom_call.1} parent=1 // pred_region
      _
    $region5: #{tpu_custom_call.1} parent=1 // pred_fallthru
      _
    // Predicated region
    $region6: #{tpu_custom_call.1} parent=1 // pred_check
      _
    $region7: #{tpu_custom_call.1} parent=1 // pred_check_branch
      %15 = sbr.rel (0) target = $region9
    $region8: #{tpu_custom_call.1} parent=1 // pred_region
      _
    $region9: #{tpu_custom_call.1} parent=1 // pred_fallthru
      _
    // Predicated region
    $region10: #{tpu_custom_call.1} parent=1 // pred_check
      _
    $region11: #{tpu_custom_call.1} parent=1 // pred_check_branch
      %17 = sbr.rel (0) target = $region13
    $region12: #{tpu_custom_call.1} parent=1 // pred_region
      _
    $region13: #{tpu_custom_call.1} parent=1 // pred_fallthru
      _
    %v18 = vld [vmem:[%s2] sm:$0x77]
    %v19 = vld [vmem:[%s2 + $0x8] sm:$0x77]
    %v20 = vld [vmem:[%s0] sm:$0xff]
    %22 = vset.pattern.permute.xlu0 0
    %23 = vperm.xlu0 %22, %v20
    %v24 = vpop.permute.xlu0 %23
    %v28 = vperm.slane %v18, 0
    %v29 = vperm.slane %v18, 4
    %v30 = vperm.slane %v19, 0
    %v31 = vperm.slane %v19, 4
    %v36 = vperm.slane %v28, 0
    %v37 = vperm.slane %v29, 0
    %v38 = vperm.slane %v30, 0
    %v39 = vperm.slane %v31, 0
    %v40 = vmul.f32 %v24, %v36
    %v41 = vmul.f32 %v24, %v37
    %v42 = vmul.f32 %v24, %v38
    %v43 = vmul.f32 %v24, %v39
    %44 = vset.pattern.permute.xlu0 1
    %45 = vperm.xlu0 %44, %v20
    %v46 = vpop.permute.xlu0 %45
    %v48 = vperm.slane %v18, 1
    %v49 = vperm.slane %v18, 5
    %v50 = vperm.slane %v19, 1
    %v51 = vperm.slane %v19, 5
    %v56 = vperm.slane %v48, 1
    %v57 = vperm.slane %v49, 1
    %v58 = vperm.slane %v50, 1
    %v59 = vperm.slane %v51, 1
    %v60 = vmul.f32 %v46, %v56
    %v61 = vmul.f32 %v46, %v57
    %v62 = vmul.f32 %v46, %v58
    %v63 = vmul.f32 %v46, %v59
    %v64 = vadd.f32 %v40, %v60
    %v65 = vadd.f32 %v41, %v61
    %v66 = vadd.f32 %v42, %v62
    %v67 = vadd.f32 %v43, %v63
    %68 = vset.pattern.permute.xlu0 2
    %69 = vperm.xlu0 %68, %v20
    %v70 = vpop.permute.xlu0 %69
    %v72 = vperm.slane %v18, 2
    %v73 = vperm.slane %v18, 6
    %v74 = vperm.slane %v19, 2
    %v75 = vperm.slane %v19, 6
    %v80 = vperm.slane %v72, 2
    %v81 = vperm.slane %v73, 2
    %v82 = vperm.slane %v74, 2
    %v83 = vperm.slane %v75, 2
    %v84 = vmul.f32 %v70, %v80
    %v85 = vmul.f32 %v70, %v81
    %v86 = vmul.f32 %v70, %v82
    %v87 = vmul.f32 %v70, %v83
    %v88 = vadd.f32 %v64, %v84
    %v89 = vadd.f32 %v65, %v85
    %v90 = vadd.f32 %v66, %v86
    %v91 = vadd.f32 %v67, %v87
    %v92 = vld [vmem:[%s1] sm:$0xff]
    %94 = vset.pattern.permute.xlu0 0
    %95 = vperm.xlu0 %94, %v92
    %v96 = vpop.permute.xlu0 %95
    %v98 = vadd.f32 %v88, %v96
    %v99 = vadd.f32 %v89, %v96
    %v100 = vadd.f32 %v90, %v96
    %v101 = vadd.f32 %v91, %v96
    %102 = vst [vmem:[#allocation4] sm:$0xff] %v98
    %103 = vst [vmem:[#allocation4 + $0x8] sm:$0xff] %v99
    %104 = vst [vmem:[#allocation4 + $0x10] sm:$0xff] %v100
    %105 = vst [vmem:[#allocation4 + $0x18] sm:$0xff] %v101
    %v106 = vmax.f32 %v98, 0.0
    %v107 = vmax.f32 %v99, 0.0
    %v108 = vmax.f32 %v100, 0.0
    %v109 = vmax.f32 %v101, 0.0
    %110 = vst [vmem:[#allocation2] sm:$0xff] %v106
    %111 = vst [vmem:[#allocation2 + $0x8] sm:$0xff] %v107
    %112 = vst [vmem:[#allocation2 + $0x10] sm:$0xff] %v108
    %113 = vst [vmem:[#allocation2 + $0x18] sm:$0xff] %v109
    // Predicated region
    $region14: #{tpu_custom_call.1} parent=1 // pred_check
      _
    $region15: #{tpu_custom_call.1} parent=1 // pred_check_branch
      %115 = sbr.rel (0) target = $region17
    $region16: #{tpu_custom_call.1} parent=1 // pred_region
      %117 = vsyncadd [#allocation3], 0
      %s119 = sshll.u32 [#allocation2], 4
      %s120 = int_to_ptr.vmem [resolvable:$true] %s119
      %s121 = sshll.u32 %s3, 4
      %s122 = int_to_ptr.hbm [resolvable:$true] %s121
      %124 = dma.vmem_to_hbm [thread:$0]  %s120, 512, %s122, [#allocation3]
    $region17: #{tpu_custom_call.1} parent=1 // pred_fallthru
      _
    // Predicated region
    $region18: #{tpu_custom_call.1} parent=1 // pred_check
      _
    $region19: #{tpu_custom_call.1} parent=1 // pred_check_branch
      %126 = sbr.rel (0) target = $region21
    $region20: #{tpu_custom_call.1} parent=1 // pred_region
      %128 = vsyncadd [#allocation5], 0
      %s130 = sshll.u32 [#allocation4], 4
      %s131 = int_to_ptr.vmem [resolvable:$true] %s130
      %s132 = sshll.u32 %s4, 4
      %s133 = int_to_ptr.hbm [resolvable:$true] %s132
      %135 = dma.vmem_to_hbm [thread:$0]  %s131, 512, %s133, [#allocation5]
    $region21: #{tpu_custom_call.1} parent=1 // pred_fallthru
      _
    // Predicated region
    $region22: #{tpu_custom_call.1} parent=1 // pred_check
      _
    $region23: #{tpu_custom_call.1} parent=1 // pred_check_branch
      %137 = sbr.rel (0) target = $region25
    $region24: #{tpu_custom_call.1} parent=1 // pred_region
      %139 = dma.done [#allocation3], 512
    $region25: #{tpu_custom_call.1} parent=1 // pred_fallthru
      _
    // Predicated region
    $region26: #{tpu_custom_call.1} parent=1 // pred_check
      _
    $region27: #{tpu_custom_call.1} parent=1 // pred_check_branch
      %141 = sbr.rel (0) target = $region29
    $region28: #{tpu_custom_call.1} parent=1 // pred_region
      %143 = dma.done [#allocation5], 512
    $region29: #{tpu_custom_call.1} parent=1 // pred_fallthru
      _
    %144 = vsyncpa [#allocation3], 1
    %145 = vsyncpa [#allocation5], 1

</llo_original>
